<compile_context>
chip_gen: v7x
topology: tpu7x:2x2x1
jax: 0.10.0
libtpu: 0.0.40
codegen_flags: <defaults>
</compile_context>

<pallas_src>
import functools

import jax
import jax.numpy as jnp
from jax import lax
from jax.experimental import pallas as pl
from jax.experimental.pallas import tpu as pltpu


def _encoding_kernel(x_ref, cw_ref, cw2_ref, s_csq_ref, scale_ref, out_ref,
                     acc_ax, acc_asum, *, n_true, tile_n):
    # x_ref:     (Bb, C, TN)  pixel tile in native NCHW layout (C on sublanes,
    #                         pixels lane-dense); may hold zero padding past n_true.
    # cw_ref:    (K, C) f32   codewords (finalize residual term)
    # cw2_ref:   (K, C)       -2 * scale * codewords, in x's dtype (MXU operand)
    # s_csq_ref: (K, 1) f32   scale * ||cw||^2
    # scale_ref: (K, 1) f32   scale
    # out_ref:   (Bb, K, C)   output block for this batch block
    # acc_ax:    (Bb, K, C) f32  running  A^T @ x
    # acc_asum:  (Bb, K, 1) f32  running  sum_n A[n, k]
    n_idx = pl.program_id(1)
    b_blk = acc_ax.shape[0]

    @pl.when(n_idx == 0)
    def _init():
        acc_ax[...] = jnp.zeros_like(acc_ax)
        acc_asum[...] = jnp.zeros_like(acc_asum)

    cw2 = cw2_ref[...]          # (K, C)
    s_csq = s_csq_ref[...]      # (K, 1)
    scale = scale_ref[...]      # (K, 1)

    need_mask = (n_true % tile_n) != 0
    if need_mask:
        lane = lax.broadcasted_iota(jnp.int32, (1, tile_n), 1)
        valid = (n_idx * tile_n + lane) < n_true                       # (1, TN)

    for b in range(b_blk):  # static unroll; b_blk is small (<= 8)
        x = x_ref[b]                                                    # (C, TN), native dtype
        x32 = x.astype(jnp.float32)
        x_sq = jnp.sum(x32 * x32, axis=0, keepdims=True)                # (1, TN) f32

        # -2*scale*(cw . x) in the (K, TN) orientation: K on sublanes, N lane-dense.
        xc2 = lax.dot_general(cw2, x, (((1,), (0,)), ((), ())),
                              preferred_element_type=jnp.float32)       # (K, TN)

        # scaled L2 distance with the scale already folded in.
        sl2 = scale * x_sq + (xc2 + s_csq)                              # (K, TN)

        # softmax over the code axis (sublanes).
        m = jnp.max(sl2, axis=0, keepdims=True)                         # (1, TN)
        e = jnp.exp(sl2 - m)                                            # (K, TN) EUP
        s = jnp.sum(e, axis=0, keepdims=True)                           # (1, TN)
        # approx=True is an EUP-only micro-opt if looser tolerance is acceptable.
        a = e * pl.reciprocal(s, approx=False)                          # (K, TN)
        if need_mask:
            a = jnp.where(valid, a, 0.0)                                # zero padded lanes

        # A^T @ x: contract the pixel axis directly (no transpose materialization).
        ax = lax.dot_general(a.astype(x.dtype), x, (((1,), (1,)), ((), ())),
                             preferred_element_type=jnp.float32)        # (K, C)
        acc_ax[b] += ax
        acc_asum[b] += jnp.sum(a, axis=1, keepdims=True)                # (K, 1)

    @pl.when(n_idx == pl.num_programs(1) - 1)
    def _finalize():
        # out[b,k,c] = sum_n A[b,n,k]*x[b,n,c] - (sum_n A[b,n,k]) * cw[k,c]
        cw32 = cw_ref[...].astype(jnp.float32)                          # (K, C)
        res = acc_ax[...] - acc_asum[...] * cw32[None]                  # (Bb, K, C)
        out_ref[...] = res.astype(out_ref.dtype)


def _vmem_budget():
    """Generation-aware (tile_cap_bytes, vmem_limit_bytes)."""
    vmem_bytes = 64 * 1024 * 1024  # conservative fallback (v7x-sized)
    try:
        info = pltpu.get_tpu_info()
        vmem_bytes = int(getattr(info, "vmem_capacity_bytes", vmem_bytes))
    except Exception:
        pass
    tile_cap = max(2 * 1024 * 1024, min(8 * 1024 * 1024, vmem_bytes // 16))
    vmem_limit = int(min(vmem_bytes // 2, 64 * 1024 * 1024))
    return tile_cap, vmem_limit


def _choose_blocking(batch, channels, n_pixels, itemsize, tile_cap):
    """Pick (b_blk, tile_n, n_pad).

    The pixel axis is padded up to a multiple of 128; tile_n is a multiple of
    128 dividing n_pad with the whole (b_blk, C, tile_n) tile <= tile_cap.  For
    small feature maps, several batch elements are blocked per grid step so the
    grid loop is not dominated by the fixed per-step overhead.
    """
    n_pad = max(128, pl.cdiv(n_pixels, 128) * 128)
    row_bytes = channels * itemsize
    max_tn = max(128, (tile_cap // max(1, row_bytes)) // 128 * 128)
    if n_pad <= max_tn:
        tile_n = n_pad
        b_blk = max(1, min(batch, 8, tile_cap // (row_bytes * tile_n)))
        while batch % b_blk:
            b_blk -= 1
    else:
        tile_n = 128
        for t in range(max_tn, 0, -128):
            if n_pad % t == 0:
                tile_n = t
                break
        b_blk = 1
    return b_blk, tile_n, n_pad


def encoding_forward(x_nchw, codewords, scale, *, tile_n=None, b_blk=None):
    """x_nchw: (B, C, H, W); codewords: (K, C); scale: (K,) -> (B, K, C)."""
    B, C, H, W = x_nchw.shape
    K, Cw = codewords.shape
    assert Cw == C
    N = H * W

    tile_cap, vmem_limit = _vmem_budget()
    auto_b, auto_t, n_pad = _choose_blocking(
        B, C, N, jnp.dtype(x_nchw.dtype).itemsize, tile_cap)
    if tile_n is None:
        tile_n = auto_t
    if b_blk is None:
        b_blk = auto_b
    assert B % b_blk == 0, (B, b_blk)
    assert tile_n % 128 == 0, tile_n
    n_pad = max(n_pad, tile_n)
    if n_pad % tile_n:
        n_pad = pl.cdiv(n_pad, tile_n) * tile_n
    nt = n_pad // tile_n

    # Native NCHW consumption: reshape is a free view.  Zero-pad the pixel axis
    # only when N is not a multiple of the tile (padded lanes masked in-kernel).
    x_flat = x_nchw.reshape(B, C, N)
    if n_pad != N:
        x_flat = jnp.pad(x_flat, ((0, 0), (0, 0), (0, n_pad - N)))

    # Tiny grid-invariant precomputations (scale folded into the MXU operand).
    scale_f = scale.astype(jnp.float32).reshape(K, 1)
    cw_f = codewords.astype(jnp.float32)
    c_sq = jnp.sum(cw_f * cw_f, axis=1, keepdims=True)          # (K, 1)
    s_csq = scale_f * c_sq                                      # (K, 1)
    cw2 = (-2.0 * scale_f * cw_f).astype(x_nchw.dtype)          # (K, C)

    kernel = functools.partial(_encoding_kernel, n_true=N, tile_n=tile_n)

    out = pl.pallas_call(
        kernel,
        out_shape=jax.ShapeDtypeStruct((B, K, C), x_nchw.dtype),
        grid_spec=pltpu.PrefetchScalarGridSpec(
            num_scalar_prefetch=0,
            grid=(B // b_blk, nt),
            in_specs=[
                pl.BlockSpec((b_blk, C, tile_n), lambda b, n: (b, 0, n)),  # x (NCHW)
                pl.BlockSpec((K, C), lambda b, n: (0, 0)),                 # codewords
                pl.BlockSpec((K, C), lambda b, n: (0, 0)),                 # -2*scale*cw
                pl.BlockSpec((K, 1), lambda b, n: (0, 0)),                 # scale*||cw||^2
                pl.BlockSpec((K, 1), lambda b, n: (0, 0)),                 # scale
            ],
            out_specs=pl.BlockSpec((b_blk, K, C), lambda b, n: (b, 0, 0)),
            scratch_shapes=[
                pltpu.VMEM((b_blk, K, C), jnp.float32),   # acc: A^T @ x
                pltpu.VMEM((b_blk, K, 1), jnp.float32),   # acc: sum_n A
            ],
        ),
        compiler_params=pltpu.CompilerParams(
            dimension_semantics=("parallel", "arbitrary"),
            vmem_limit_bytes=vmem_limit),
    )(x_flat, cw_f, cw2, s_csq, scale_f)
    return out


def reference_forward(x_nchw, codewords, scale):
    """Pure-JAX reference mirroring the PyTorch module exactly."""
    B, C, H, W = x_nchw.shape
    x = jnp.transpose(x_nchw.reshape(B, C, -1), (0, 2, 1))               # (B, N, C)
    diff = x[:, :, None, :] - codewords[None, None, :, :]                # (B, N, K, C)
    sl2 = scale[None, None, :] * jnp.sum(diff ** 2, axis=3)              # (B, N, K)
    a = jax.nn.softmax(sl2, axis=2)                                      # (B, N, K)
    enc = jnp.sum(a[..., None] * diff, axis=1)                           # (B, K, C)
    return enc


if __name__ == "__main__":
    key = jax.random.PRNGKey(0)
    kx, kc, ks, kx2 = jax.random.split(key, 4)

    B, C, K = 2, 32, 8
    # Deterministic parameter init mirroring the PyTorch __init__:
    # codewords ~ U(-std, std) with std = 1/sqrt(K*C); scale ~ U(-1, 0).
    std = 1.0 / (K * C) ** 0.5
    codewords = jax.random.uniform(kc, (K, C), minval=-std, maxval=std,
                                   dtype=jnp.float32)
    scale = jax.random.uniform(ks, (K,), minval=-1.0, maxval=0.0,
                               dtype=jnp.float32)

    # Case 1: 16x16 feature map -> auto blocking batches both b's into one grid step.
    x1 = jax.random.normal(kx, (B, C, 16, 16), dtype=jnp.float32)
    out1 = jax.block_until_ready(encoding_forward(x1, codewords, scale))
    ref1 = reference_forward(x1, codewords, scale)
    assert out1.shape == (B, K, C)
    assert jnp.allclose(out1, ref1, atol=2e-4, rtol=2e-4), (
        f"case1 max abs err = {jnp.max(jnp.abs(out1 - ref1))}")

    # Case 2: force the tiled-N accumulation path (grid = (2, 2)).
    out2 = jax.block_until_ready(
        encoding_forward(x1, codewords, scale, tile_n=128, b_blk=1))
    assert jnp.allclose(out2, ref1, atol=2e-4, rtol=2e-4), (
        f"case2 max abs err = {jnp.max(jnp.abs(out2 - ref1))}")

    # Case 3: non-128-divisible pixel count (15x15 = 225) -> pad + in-kernel lane mask.
    x3 = jax.random.normal(kx2, (B, C, 15, 15), dtype=jnp.float32)
    out3 = jax.block_until_ready(encoding_forward(x3, codewords, scale))
    ref3 = reference_forward(x3, codewords, scale)
    assert jnp.allclose(out3, ref3, atol=2e-4, rtol=2e-4), (
        f"case3 max abs err = {jnp.max(jnp.abs(out3 - ref3))}")

    print("KERNEL_OK")
</pallas_src>

<mosaic_0001>
module attributes {stable_mosaic.version = 11 : i64} {
  func.func @_encoding_kernel(%arg0: i32, %arg1: i32, %arg2: memref<2x32x256xf32, #tpu.memory_space<vmem>>, %arg3: memref<8x32xf32, #tpu.memory_space<vmem>>, %arg4: memref<8x32xf32, #tpu.memory_space<vmem>>, %arg5: memref<8x1xf32, #tpu.memory_space<vmem>>, %arg6: memref<8x1xf32, #tpu.memory_space<vmem>>, %arg7: memref<2x8x32xf32, #tpu.memory_space<vmem>>, %arg8: memref<2x8x32xf32, #tpu.memory_space<vmem>>, %arg9: memref<2x8x1xf32, #tpu.memory_space<vmem>>) attributes {dimension_semantics = [#tpu.dimension_semantics<parallel>, #tpu.dimension_semantics<arbitrary>], iteration_bounds = array<i64: 1, 1>, scalar_prefetch = 0 : i64, scratch_operands = 2 : i64, tpu.core_type = #tpu.core_type<tc>, window_params = [{transform_indices = @transform_0, window_bounds = array<i64: 2, 32, 256>}, {pipeline_mode = #tpu.pipeline_mode<synchronous>, transform_indices = @transform_1, window_bounds = array<i64: 8, 32>}, {pipeline_mode = #tpu.pipeline_mode<synchronous>, transform_indices = @transform_2, window_bounds = array<i64: 8, 32>}, {pipeline_mode = #tpu.pipeline_mode<synchronous>, transform_indices = @transform_3, window_bounds = array<i64: 8, 1>}, {pipeline_mode = #tpu.pipeline_mode<synchronous>, transform_indices = @transform_4, window_bounds = array<i64: 8, 1>}, {transform_indices = @transform_5, window_bounds = array<i64: 2, 8, 32>}]} {
    %c0_i32 = arith.constant 0 : i32
    %0 = arith.cmpi eq, %arg1, %c0_i32 : i32
    %1 = arith.extui %0 : i1 to i32
    %c0_i32_0 = arith.constant 0 : i32
    %2 = arith.cmpi ne, %1, %c0_i32_0 : i32
    scf.if %2 {
      %cst_48 = arith.constant 0.000000e+00 : f32
      %83 = vector.broadcast %cst_48 : f32 to vector<2x8x32xf32>
      %c0_49 = arith.constant 0 : index
      %c0_50 = arith.constant 0 : index
      %c0_51 = arith.constant 0 : index
      %84 = vector.load %arg8[%c0_49, %c0_50, %c0_51] : memref<2x8x32xf32, #tpu.memory_space<vmem>>, vector<2x8x32xf32>
      tpu.vector_store %arg8[%c0_49, %c0_50, %c0_51], %83 {strides = array<i32>} : memref<2x8x32xf32, #tpu.memory_space<vmem>>, vector<2x8x32xf32>,
      %cst_52 = arith.constant 0.000000e+00 : f32
      %85 = vector.broadcast %cst_52 : f32 to vector<2x8x1xf32>
      %c0_53 = arith.constant 0 : index
      %c0_54 = arith.constant 0 : index
      %c0_55 = arith.constant 0 : index
      %86 = vector.load %arg9[%c0_53, %c0_54, %c0_55] : memref<2x8x1xf32, #tpu.memory_space<vmem>>, vector<2x8x1xf32>
      tpu.vector_store %arg9[%c0_53, %c0_54, %c0_55], %85 {strides = array<i32>} : memref<2x8x1xf32, #tpu.memory_space<vmem>>, vector<2x8x1xf32>,
    } else {
    }
    %c0 = arith.constant 0 : index
    %c0_1 = arith.constant 0 : index
    %3 = vector.load %arg4[%c0, %c0_1] : memref<8x32xf32, #tpu.memory_space<vmem>>, vector<8x32xf32>
    %c0_2 = arith.constant 0 : index
    %c0_3 = arith.constant 0 : index
    %4 = vector.load %arg5[%c0_2, %c0_3] : memref<8x1xf32, #tpu.memory_space<vmem>>, vector<8x1xf32>
    %c0_4 = arith.constant 0 : index
    %c0_5 = arith.constant 0 : index
    %5 = vector.load %arg6[%c0_4, %c0_5] : memref<8x1xf32, #tpu.memory_space<vmem>>, vector<8x1xf32>
    %c0_6 = arith.constant 0 : index
    %c0_7 = arith.constant 0 : index
    %c0_8 = arith.constant 0 : index
    %6 = vector.load %arg2[%c0_6, %c0_7, %c0_8] : memref<2x32x256xf32, #tpu.memory_space<vmem>>, vector<1x32x256xf32>
    %7 = vector.shape_cast %6 : vector<1x32x256xf32> to vector<32x256xf32>
    %8 = arith.mulf %7, %7 : vector<32x256xf32>
    %cst = arith.constant dense<0.000000e+00> : vector<256xf32>
    %9 = vector.multi_reduction <add>, %8, %cst [0] : vector<32x256xf32> to vector<256xf32>
    %10 = vector.shape_cast %9 : vector<256xf32> to vector<1x256xf32>
    %cst_9 = arith.constant dense<0.000000e+00> : vector<8x256xf32>
    %11 = tpu.matmul %3, %7, %cst_9 {dimension_numbers = #tpu.dot_dimension_numbers<[1], [0], [0], [1], [0, 0, 1, 1], [], []>} : vector<8x32xf32>, vector<32x256xf32>, vector<8x256xf32> -> vector<8x256xf32>
    %12 = vector.broadcast %5 : vector<8x1xf32> to vector<8x256xf32>
    %13 = vector.broadcast %10 : vector<1x256xf32> to vector<8x256xf32>
    %14 = arith.mulf %12, %13 : vector<8x256xf32>
    %15 = vector.broadcast %4 : vector<8x1xf32> to vector<8x256xf32>
    %16 = arith.addf %11, %15 : vector<8x256xf32>
    %17 = arith.addf %14, %16 : vector<8x256xf32>
    %cst_10 = arith.constant dense<0xFF800000> : vector<256xf32>
    %18 = vector.multi_reduction <maximumf>, %17, %cst_10 [0] : vector<8x256xf32> to vector<256xf32>
    %19 = vector.shape_cast %18 : vector<256xf32> to vector<1x256xf32>
    %20 = vector.broadcast %19 : vector<1x256xf32> to vector<8x256xf32>
    %21 = arith.subf %17, %20 : vector<8x256xf32>
    %22 = math.exp %21 : vector<8x256xf32>
    %cst_11 = arith.constant dense<0.000000e+00> : vector<256xf32>
    %23 = vector.multi_reduction <add>, %22, %cst_11 [0] : vector<8x256xf32> to vector<256xf32>
    %24 = vector.shape_cast %23 : vector<256xf32> to vector<1x256xf32>
    %25 = tpu.reciprocal %24 : vector<1x256xf32> -> vector<1x256xf32>
    %26 = vector.broadcast %25 : vector<1x256xf32> to vector<8x256xf32>
    %27 = arith.mulf %22, %26 : vector<8x256xf32>
    %cst_12 = arith.constant dense<0.000000e+00> : vector<8x32xf32>
    %28 = tpu.matmul %27, %7, %cst_12 {dimension_numbers = #tpu.dot_dimension_numbers<[1], [1], [0], [0], [0, 0, 1, 0], [], []>} : vector<8x256xf32>, vector<32x256xf32>, vector<8x32xf32> -> vector<8x32xf32>
    %c0_13 = arith.constant 0 : index
    %c0_14 = arith.constant 0 : index
    %c0_15 = arith.constant 0 : index
    %29 = vector.load %arg8[%c0_13, %c0_14, %c0_15] : memref<2x8x32xf32, #tpu.memory_space<vmem>>, vector<1x8x32xf32>
    %30 = vector.shape_cast %29 : vector<1x8x32xf32> to vector<8x32xf32>
    %31 = arith.addf %30, %28 : vector<8x32xf32>
    %c0_16 = arith.constant 0 : index
    %c0_17 = arith.constant 0 : index
    %c0_18 = arith.constant 0 : index
    %32 = vector.load %arg8[%c0_16, %c0_17, %c0_18] : memref<2x8x32xf32, #tpu.memory_space<vmem>>, vector<1x8x32xf32>
    %33 = vector.shape_cast %32 : vector<1x8x32xf32> to vector<8x32xf32>
    %34 = vector.shape_cast %31 : vector<8x32xf32> to vector<1x8x32xf32>
    tpu.vector_store %arg8[%c0_16, %c0_17, %c0_18], %34 {strides = array<i32>} : memref<2x8x32xf32, #tpu.memory_space<vmem>>, vector<1x8x32xf32>,
    %c0_19 = arith.constant 0 : index
    %c0_20 = arith.constant 0 : index
    %c0_21 = arith.constant 0 : index
    %35 = vector.load %arg9[%c0_19, %c0_20, %c0_21] : memref<2x8x1xf32, #tpu.memory_space<vmem>>, vector<1x8x1xf32>
    %36 = vector.shape_cast %35 : vector<1x8x1xf32> to vector<8x1xf32>
    %cst_22 = arith.constant dense<0.000000e+00> : vector<8xf32>
    %37 = vector.multi_reduction <add>, %27, %cst_22 [1] : vector<8x256xf32> to vector<8xf32>
    %38 = vector.shape_cast %37 : vector<8xf32> to vector<8x1xf32>
    %39 = arith.addf %36, %38 : vector<8x1xf32>
    %c0_23 = arith.constant 0 : index
    %c0_24 = arith.constant 0 : index
    %c0_25 = arith.constant 0 : index
    %40 = vector.load %arg9[%c0_23, %c0_24, %c0_25] : memref<2x8x1xf32, #tpu.memory_space<vmem>>, vector<1x8x1xf32>
    %41 = vector.shape_cast %40 : vector<1x8x1xf32> to vector<8x1xf32>
    %42 = vector.shape_cast %39 : vector<8x1xf32> to vector<1x8x1xf32>
    tpu.vector_store %arg9[%c0_23, %c0_24, %c0_25], %42 {strides = array<i32>} : memref<2x8x1xf32, #tpu.memory_space<vmem>>, vector<1x8x1xf32>,
    %c1 = arith.constant 1 : index
    %c0_26 = arith.constant 0 : index
    %c0_27 = arith.constant 0 : index
    %43 = vector.load %arg2[%c1, %c0_26, %c0_27] : memref<2x32x256xf32, #tpu.memory_space<vmem>>, vector<1x32x256xf32>
    %44 = vector.shape_cast %43 : vector<1x32x256xf32> to vector<32x256xf32>
    %45 = arith.mulf %44, %44 : vector<32x256xf32>
    %cst_28 = arith.constant dense<0.000000e+00> : vector<256xf32>
    %46 = vector.multi_reduction <add>, %45, %cst_28 [0] : vector<32x256xf32> to vector<256xf32>
    %47 = vector.shape_cast %46 : vector<256xf32> to vector<1x256xf32>
    %cst_29 = arith.constant dense<0.000000e+00> : vector<8x256xf32>
    %48 = tpu.matmul %3, %44, %cst_29 {dimension_numbers = #tpu.dot_dimension_numbers<[1], [0], [0], [1], [0, 0, 1, 1], [], []>} : vector<8x32xf32>, vector<32x256xf32>, vector<8x256xf32> -> vector<8x256xf32>
    %49 = vector.broadcast %5 : vector<8x1xf32> to vector<8x256xf32>
    %50 = vector.broadcast %47 : vector<1x256xf32> to vector<8x256xf32>
    %51 = arith.mulf %49, %50 : vector<8x256xf32>
    %52 = vector.broadcast %4 : vector<8x1xf32> to vector<8x256xf32>
    %53 = arith.addf %48, %52 : vector<8x256xf32>
    %54 = arith.addf %51, %53 : vector<8x256xf32>
    %cst_30 = arith.constant dense<0xFF800000> : vector<256xf32>
    %55 = vector.multi_reduction <maximumf>, %54, %cst_30 [0] : vector<8x256xf32> to vector<256xf32>
    %56 = vector.shape_cast %55 : vector<256xf32> to vector<1x256xf32>
    %57 = vector.broadcast %56 : vector<1x256xf32> to vector<8x256xf32>
    %58 = arith.subf %54, %57 : vector<8x256xf32>
    %59 = math.exp %58 : vector<8x256xf32>
    %cst_31 = arith.constant dense<0.000000e+00> : vector<256xf32>
    %60 = vector.multi_reduction <add>, %59, %cst_31 [0] : vector<8x256xf32> to vector<256xf32>
    %61 = vector.shape_cast %60 : vector<256xf32> to vector<1x256xf32>
    %62 = tpu.reciprocal %61 : vector<1x256xf32> -> vector<1x256xf32>
    %63 = vector.broadcast %62 : vector<1x256xf32> to vector<8x256xf32>
    %64 = arith.mulf %59, %63 : vector<8x256xf32>
    %cst_32 = arith.constant dense<0.000000e+00> : vector<8x32xf32>
    %65 = tpu.matmul %64, %44, %cst_32 {dimension_numbers = #tpu.dot_dimension_numbers<[1], [1], [0], [0], [0, 0, 1, 0], [], []>} : vector<8x256xf32>, vector<32x256xf32>, vector<8x32xf32> -> vector<8x32xf32>
    %c1_33 = arith.constant 1 : index
    %c0_34 = arith.constant 0 : index
    %c0_35 = arith.constant 0 : index
    %66 = vector.load %arg8[%c1_33, %c0_34, %c0_35] : memref<2x8x32xf32, #tpu.memory_space<vmem>>, vector<1x8x32xf32>
    %67 = vector.shape_cast %66 : vector<1x8x32xf32> to vector<8x32xf32>
    %68 = arith.addf %67, %65 : vector<8x32xf32>
    %c1_36 = arith.constant 1 : index
    %c0_37 = arith.constant 0 : index
    %c0_38 = arith.constant 0 : index
    %69 = vector.load %arg8[%c1_36, %c0_37, %c0_38] : memref<2x8x32xf32, #tpu.memory_space<vmem>>, vector<1x8x32xf32>
    %70 = vector.shape_cast %69 : vector<1x8x32xf32> to vector<8x32xf32>
    %71 = vector.shape_cast %68 : vector<8x32xf32> to vector<1x8x32xf32>
    tpu.vector_store %arg8[%c1_36, %c0_37, %c0_38], %71 {strides = array<i32>} : memref<2x8x32xf32, #tpu.memory_space<vmem>>, vector<1x8x32xf32>,
    %c1_39 = arith.constant 1 : index
    %c0_40 = arith.constant 0 : index
    %c0_41 = arith.constant 0 : index
    %72 = vector.load %arg9[%c1_39, %c0_40, %c0_41] : memref<2x8x1xf32, #tpu.memory_space<vmem>>, vector<1x8x1xf32>
    %73 = vector.shape_cast %72 : vector<1x8x1xf32> to vector<8x1xf32>
    %cst_42 = arith.constant dense<0.000000e+00> : vector<8xf32>
    %74 = vector.multi_reduction <add>, %64, %cst_42 [1] : vector<8x256xf32> to vector<8xf32>
    %75 = vector.shape_cast %74 : vector<8xf32> to vector<8x1xf32>
    %76 = arith.addf %73, %75 : vector<8x1xf32>
    %c1_43 = arith.constant 1 : index
    %c0_44 = arith.constant 0 : index
    %c0_45 = arith.constant 0 : index
    %77 = vector.load %arg9[%c1_43, %c0_44, %c0_45] : memref<2x8x1xf32, #tpu.memory_space<vmem>>, vector<1x8x1xf32>
    %78 = vector.shape_cast %77 : vector<1x8x1xf32> to vector<8x1xf32>
    %79 = vector.shape_cast %76 : vector<8x1xf32> to vector<1x8x1xf32>
    tpu.vector_store %arg9[%c1_43, %c0_44, %c0_45], %79 {strides = array<i32>} : memref<2x8x1xf32, #tpu.memory_space<vmem>>, vector<1x8x1xf32>,
    %c0_i32_46 = arith.constant 0 : i32
    %80 = arith.cmpi eq, %arg1, %c0_i32_46 : i32
    %81 = arith.extui %80 : i1 to i32
    %c0_i32_47 = arith.constant 0 : i32
    %82 = arith.cmpi ne, %81, %c0_i32_47 : i32
    scf.if %82 {
      %c0_48 = arith.constant 0 : index
      %c0_49 = arith.constant 0 : index
      %83 = vector.load %arg3[%c0_48, %c0_49] : memref<8x32xf32, #tpu.memory_space<vmem>>, vector<8x32xf32>
      %c0_50 = arith.constant 0 : index
      %c0_51 = arith.constant 0 : index
      %c0_52 = arith.constant 0 : index
      %84 = vector.load %arg8[%c0_50, %c0_51, %c0_52] : memref<2x8x32xf32, #tpu.memory_space<vmem>>, vector<2x8x32xf32>
      %c0_53 = arith.constant 0 : index
      %c0_54 = arith.constant 0 : index
      %c0_55 = arith.constant 0 : index
      %85 = vector.load %arg9[%c0_53, %c0_54, %c0_55] : memref<2x8x1xf32, #tpu.memory_space<vmem>>, vector<2x8x1xf32>
      %86 = vector.shape_cast %83 : vector<8x32xf32> to vector<1x8x32xf32>
      %87 = vector.broadcast %85 : vector<2x8x1xf32> to vector<2x8x32xf32>
      %88 = vector.broadcast %86 : vector<1x8x32xf32> to vector<2x8x32xf32>
      %89 = arith.mulf %87, %88 : vector<2x8x32xf32>
      %90 = arith.subf %84, %89 : vector<2x8x32xf32>
      %c0_56 = arith.constant 0 : index
      %c0_57 = arith.constant 0 : index
      %c0_58 = arith.constant 0 : index
      %91 = vector.load %arg7[%c0_56, %c0_57, %c0_58] : memref<2x8x32xf32, #tpu.memory_space<vmem>>, vector<2x8x32xf32>
      tpu.vector_store %arg7[%c0_56, %c0_57, %c0_58], %90 {strides = array<i32>} : memref<2x8x32xf32, #tpu.memory_space<vmem>>, vector<2x8x32xf32>,
    } else {
    }
    return
  }
  func.func @transform_0(%arg0: i32, %arg1: i32) -> (i32, i32, i32) {
    %c0_i32 = arith.constant 0 : i32
    %c0_i32_0 = arith.constant 0 : i32
    return %arg0, %c0_i32, %arg1 : i32, i32, i32
  }
  func.func @transform_1(%arg0: i32, %arg1: i32) -> (i32, i32) {
    %c0_i32 = arith.constant 0 : i32
    %c0_i32_0 = arith.constant 0 : i32
    %c0_i32_1 = arith.constant 0 : i32
    return %c0_i32, %c0_i32_0 : i32, i32
  }
  func.func @transform_2(%arg0: i32, %arg1: i32) -> (i32, i32) {
    %c0_i32 = arith.constant 0 : i32
    %c0_i32_0 = arith.constant 0 : i32
    %c0_i32_1 = arith.constant 0 : i32
    return %c0_i32, %c0_i32_0 : i32, i32
  }
  func.func @transform_3(%arg0: i32, %arg1: i32) -> (i32, i32) {
    %c0_i32 = arith.constant 0 : i32
    %c0_i32_0 = arith.constant 0 : i32
    %c0_i32_1 = arith.constant 0 : i32
    return %c0_i32, %c0_i32_0 : i32, i32
  }
  func.func @transform_4(%arg0: i32, %arg1: i32) -> (i32, i32) {
    %c0_i32 = arith.constant 0 : i32
    %c0_i32_0 = arith.constant 0 : i32
    %c0_i32_1 = arith.constant 0 : i32
    return %c0_i32, %c0_i32_0 : i32, i32
  }
  func.func @transform_5(%arg0: i32, %arg1: i32) -> (i32, i32, i32) {
    %c0_i32 = arith.constant 0 : i32
    %c0_i32_0 = arith.constant 0 : i32
    %c0_i32_1 = arith.constant 0 : i32
    return %arg0, %c0_i32, %c0_i32_0 : i32, i32, i32
  }
}

</mosaic_0001>

<llo_original>
// kernel: tpu_custom_call.1
$region0: #{tpu_custom_call.1}
  #allocation0 [shape = 'u32[]', space=smem, size = 0x4, offset = 0x4, fixed_abs, tag = 'smem constant byte address 0x4 - core index']
  #allocation1 [shape = 'u32[144,128]{1,0:T(1,128)}', space=vmem, size = 0x12000, scoped, tag = 'internal scratch']
  #allocation2 [shape = 'f32[2,8,32]{2,1,0:T(8,128)}', space=vmem, size = 0x2000, scoped, tag = 'scratch operand']
  #allocation3 [shape = 'f32[2,8,1]{2,1,0:T(8,128)}', space=vmem, size = 0x2000, scoped, tag = 'scratch operand']
  %s0 = inlined_call_operand.hbm [shape: f32[2,32,256], index: 0, kind: input, shape index: {}]
  %s1 = inlined_call_operand.vmem [shape: f32[8,32], index: 1, kind: input, shape index: {}]
  %s2 = inlined_call_operand.vmem [shape: f32[8,32], index: 2, kind: input, shape index: {}]
  %s3 = inlined_call_operand.vmem [shape: f32[8,1], index: 3, kind: input, shape index: {}]
  %s4 = inlined_call_operand.vmem [shape: f32[8,1], index: 4, kind: input, shape index: {}]
  %s5 = inlined_call_operand.hbm [shape: f32[2,8,32], index: 5, kind: output, shape index: {}]
  %s6 = sld [smem:[#allocation0]]
  $region42: #{tpu_custom_call.1} parent=0
    _
  %s8 = ssub.s32 1, %s6
  %s9 = scalar_select 0, %s8, %s6
  $region1: #{tpu_custom_call.1} parent=0
    #allocation4 [shape = 'u8[65536]{0}', space=vmem, size = 0x10000, scoped, tag = 'input window, operand 0, single buffered']
    #allocation5 [shape = 's32[1]{0}', space=sflag, size = 0x4, scoped, tag = 'scoped memory for tpu_custom_call.1']
    #allocation6 [shape = 's32[1]{0}', space=sflag, size = 0x4, scoped, tag = 'scoped memory for tpu_custom_call.1']
    #allocation7 [shape = 'u8[8192]{0}', space=vmem, size = 0x2000, scoped, tag = 'output window, operand 0, single buffered']
    %10 = vsyncpa [#allocation5], 0
    %11 = vsyncpa [#allocation6], 0
    // Predicated region
    $region2: #{tpu_custom_call.1} parent=1 // pred_check
      _
    $region3: #{tpu_custom_call.1} parent=1 // pred_check_branch
      %13 = sbr.rel (0) target = $region5
    $region4: #{tpu_custom_call.1} parent=1 // pred_region
      %s15 = ssub.s32 2048, 2048
      %16 = vsyncadd [#allocation5], %s15
      %s17 = sshll.u32 [#allocation4], 4
      %s18 = int_to_ptr.vmem [resolvable:$true] %s17
      %23 = dma.hbm_to_vmem [thread:$0]  %s0, 2048, %s18, [#allocation5], 256, 256, 16
    $region5: #{tpu_custom_call.1} parent=1 // pred_fallthru
      _
    // Predicated region
    $region6: #{tpu_custom_call.1} parent=1 // pred_check
      _
    $region7: #{tpu_custom_call.1} parent=1 // pred_check_branch
      %25 = sbr.rel (0) target = $region9
    $region8: #{tpu_custom_call.1} parent=1 // pred_region
      _
    $region9: #{tpu_custom_call.1} parent=1 // pred_fallthru
      _
    // Predicated region
    $region10: #{tpu_custom_call.1} parent=1 // pred_check
      _
    $region11: #{tpu_custom_call.1} parent=1 // pred_check_branch
      %27 = sbr.rel (0) target = $region13
    $region12: #{tpu_custom_call.1} parent=1 // pred_region
      _
    $region13: #{tpu_custom_call.1} parent=1 // pred_fallthru
      _
    // Predicated region
    $region14: #{tpu_custom_call.1} parent=1 // pred_check
      _
    $region15: #{tpu_custom_call.1} parent=1 // pred_check_branch
      %29 = sbr.rel (0) target = $region17
    $region16: #{tpu_custom_call.1} parent=1 // pred_region
      _
    $region17: #{tpu_custom_call.1} parent=1 // pred_fallthru
      _
    // Predicated region
    $region18: #{tpu_custom_call.1} parent=1 // pred_check
      _
    $region19: #{tpu_custom_call.1} parent=1 // pred_check_branch
      %31 = sbr.rel (0) target = $region21
    $region20: #{tpu_custom_call.1} parent=1 // pred_region
      _
    $region21: #{tpu_custom_call.1} parent=1 // pred_fallthru
      _
    // Predicated region
    $region22: #{tpu_custom_call.1} parent=1 // pred_check
      _
    $region23: #{tpu_custom_call.1} parent=1 // pred_check_branch
      %33 = sbr.rel (0) target = $region25
    $region24: #{tpu_custom_call.1} parent=1 // pred_region
      %34 = dma.done [#allocation5], 2048
    $region25: #{tpu_custom_call.1} parent=1 // pred_fallthru
      _
    %p35 = scmp.eq.s32.totalorder 0, 0
    // Predicated region
    $region26: #{tpu_custom_call.1} parent=1 // pred_check
      %p36 = pneg %p35
    $region27: #{tpu_custom_call.1} parent=1 // pred_check_branch
      %38 = sbr.rel (%p36) target = $region29
    $region28: #{tpu_custom_call.1} parent=1 // pred_region
      %vm39 = vcmask 261120
      %40 = vst.msk [vmem:[#allocation2] sm:$0xff] %vm39, 0.0
      %41 = vst.msk [vmem:[#allocation2 + $0x8] sm:$0xff] %vm39, 0.0
      %vm42 = vcmask 7168
      %43 = vst.msk [vmem:[#allocation3] sm:$0xff] %vm42, 0.0
      %44 = vst.msk [vmem:[#allocation3 + $0x8] sm:$0xff] %vm42, 0.0
    $region29: #{tpu_custom_call.1} parent=1 // pred_fallthru
      _
    %v45 = vld [vmem:[%s2] sm:$0xff]
    %v46 = vld [vmem:[%s3] sm:$0xff]
    %v47 = vld [vmem:[%s4] sm:$0xff]
    %v48 = vld [vmem:[#allocation4] sm:$0xff]
    %v49 = vld [vmem:[#allocation4 + $0x8] sm:$0xff]
    %v50 = vld [vmem:[#allocation4 + $0x10] sm:$0xff]
    %v51 = vld [vmem:[#allocation4 + $0x18] sm:$0xff]
    %v52 = vld [vmem:[#allocation4 + $0x20] sm:$0xff]
    %v53 = vld [vmem:[#allocation4 + $0x28] sm:$0xff]
    %v54 = vld [vmem:[#allocation4 + $0x30] sm:$0xff]
    %v55 = vld [vmem:[#allocation4 + $0x38] sm:$0xff]
    %v56 = vmul.f32 %v48, %v48
    %v57 = vmul.f32 %v49, %v49
    %v58 = vmul.f32 %v50, %v50
    %v59 = vmul.f32 %v51, %v51
    %v60 = vmul.f32 %v52, %v52
    %v61 = vmul.f32 %v53, %v53
    %v62 = vmul.f32 %v54, %v54
    %v63 = vmul.f32 %v55, %v55
    %v64 = vadd.f32 %v56, %v58
    %v65 = vadd.f32 %v64, %v60
    %v66 = vadd.f32 %v65, %v62
    %v67 = vrot.slane %v66, 4
    %v68 = vadd.f32 %v66, %v67
    %v69 = vrot.slane %v68, 2
    %v70 = vadd.f32 %v68, %v69
    %v71 = vrot.slane %v70, 1
    %v72 = vadd.f32 %v70, %v71
    %v73 = vadd.f32 %v57, %v59
    %v74 = vadd.f32 %v73, %v61
    %v75 = vadd.f32 %v74, %v63
    %v76 = vrot.slane %v75, 4
    %v77 = vadd.f32 %v75, %v76
    %v78 = vrot.slane %v77, 2
    %v79 = vadd.f32 %v77, %v78
    %v80 = vrot.slane %v79, 1
    %v81 = vadd.f32 %v79, %v80
    %83 = vset.pattern.permute.xlu0 0
    %84 = vperm.xlu0 %83, %v47
    %v85 = vpop.permute.xlu0 %84
    %v87 = vmul.f32 %v85, %v72
    %v88 = vmul.f32 %v85, %v81
    %90 = vset.pattern.permute.xlu0 0
    %91 = vperm.xlu0 %90, %v46
    %v92 = vpop.permute.xlu0 %91
    %vm94 = vcmask 261120
    %v96 = vsel %vm94, %v45, 0
    %98 = vmatprep.subr.mxu0 %v49
    %99 = vmatpush1.msra.mxu0 %v48
    %100 = vmatprep.subr.mxu0 %v51
    %101 = vmatpush1.msra.mxu0 %v50
    %102 = vmatprep.subr.mxu0 %v53
    %103 = vmatpush1.msra.mxu0 %v52
    %104 = vmatprep.subr.mxu0 %v55
    %105 = vmatpush1.msra.mxu0 %v54
    %106 = vmatprep.subr.mxu0 0.0
    %107 = vmatpush1.msra.mxu0 0.0
    %108 = vmatprep.subr.mxu0 0.0
    %109 = vmatpush1.msra.mxu0 0.0
    %110 = vmatprep.subr.mxu0 0.0
    %111 = vmatpush1.msra.mxu0 0.0
    %112 = vmatprep.subr.mxu0 0.0
    %113 = vmatpush1.msra.mxu0 0.0
    %114 = vmatprep.subr.mxu0 0.0
    %115 = vmatpush1.msra.mxu0 0.0
    %116 = vmatprep.subr.mxu0 0.0
    %117 = vmatpush1.msra.mxu0 0.0
    %118 = vmatprep.subr.mxu0 0.0
    %119 = vmatpush1.msra.mxu0 0.0
    %120 = vmatprep.subr.mxu0 0.0
    %121 = vmatpush1.msra.mxu0 0.0
    %122 = vmatprep.subr.mxu0 0.0
    %123 = vmatpush1.msra.mxu0 0.0
    %124 = vmatprep.subr.mxu0 0.0
    %125 = vmatpush1.msra.mxu0 0.0
    %126 = vmatprep.subr.mxu0 0.0
    %127 = vmatpush1.msra.mxu0 0.0
    %128 = vmatprep.subr.mxu0 0.0
    %129 = vmatpush1.msra.mxu0 0.0
    %130 = vmatprep.subr.mxu0 0.0
    %131 = vmatpush1.msra.mxu0 0.0
    %132 = vmatprep.subr.mxu0 0.0
    %133 = vmatpush1.msra.mxu0 0.0
    %134 = vmatprep.subr.mxu0 0.0
    %135 = vmatpush1.msra.mxu0 0.0
    %136 = vmatprep.subr.mxu0 0.0
    %137 = vmatpush1.msra.mxu0 0.0
    %138 = vmatprep.subr.mxu0 0.0
    %139 = vmatpush1.msra.mxu0 0.0
    %140 = vmatprep.subr.mxu0 0.0
    %141 = vmatpush1.msra.mxu0 0.0
    %142 = vmatprep.subr.mxu0 0.0
    %143 = vmatpush1.msra.mxu0 0.0
    %144 = vmatprep.subr.mxu0 0.0
    %145 = vmatpush1.msra.mxu0 0.0
    %146 = vmatprep.subr.mxu0 0.0
    %147 = vmatpush1.msra.mxu0 0.0
    %148 = vmatprep.subr.mxu0 0.0
    %149 = vmatpush1.msra.mxu0 0.0
    %150 = vmatprep.subr.mxu0 0.0
    %151 = vmatpush1.msra.mxu0 0.0
    %152 = vmatprep.subr.mxu0 0.0
    %153 = vmatpush1.msra.mxu0 0.0
    %154 = vmatprep.subr.mxu0 0.0
    %155 = vmatpush1.msra.mxu0 0.0
    %156 = vmatprep.subr.mxu0 0.0
    %157 = vmatpush1.msra.mxu0 0.0
    %158 = vmatprep.subr.mxu0 0.0
    %159 = vmatpush1.msra.mxu0 0.0
    %160 = vmatprep.subr.mxu0 0.0
    %161 = vmatpush1.msra.mxu0 0.0
    %162 = vmatprep.mubr.f32.mxu0 0.0
    %163 = vmatmul.mubr.f32.gmra.mrb[0].mxu0 %v96
    %v164 = vpop.f32.mrb[0].mxu0
    %v165 = vadd.f32 %v92, %v164
    %v166 = vpop.f32.mrb[0].mxu0
    %v167 = vadd.f32 %v92, %v166
    %168 = vdwg.mxu0
    %v169 = vadd.f32 %v87, %v165
    %v170 = vadd.f32 %v88, %v167
    %v171 = vrot.slane %v169, 4
    %v172 = vmax.f32 %v169, %v171
    %v173 = vrot.slane %v172, 2
    %v174 = vmax.f32 %v172, %v173
    %v175 = vrot.slane %v174, 1
    %v176 = vmax.f32 %v174, %v175
    %v177 = vrot.slane %v170, 4
    %v178 = vmax.f32 %v170, %v177
    %v179 = vrot.slane %v178, 2
    %v180 = vmax.f32 %v178, %v179
    %v181 = vrot.slane %v180, 1
    %v182 = vmax.f32 %v180, %v181
    %v183 = vsub.f32 %v169, %v176
    %v184 = vsub.f32 %v170, %v182
    %v185 = vmul.f32 %v183, 1.442695
    %v186 = vpow.pop %v185
    %v187 = vmul.f32 %v184, 1.442695
    %v188 = vpow.pop %v187
    %v189 = vrot.slane %v186, 4
    %v190 = vadd.f32 %v186, %v189
    %v191 = vrot.slane %v190, 2
    %v192 = vadd.f32 %v190, %v191
    %v193 = vrot.slane %v192, 1
    %v194 = vadd.f32 %v192, %v193
    %v195 = vrot.slane %v188, 4
    %v196 = vadd.f32 %v188, %v195
    %v197 = vrot.slane %v196, 2
    %v198 = vadd.f32 %v196, %v197
    %v199 = vrot.slane %v198, 1
    %v200 = vadd.f32 %v198, %v199
    %v201 = vrcp.pop %v194
    %v202 = vrcp.pop %v200
    %v203 = vmul.f32 %v186, %v201
    %v204 = vmul.f32 %v188, %v202
    %205 = vmatprep.subr.mxu0 %v49
    %206 = vmatpush1.xpose.msra.mxu0 %v48
    %207 = vmatprep.subr.mxu0 %v51
    %208 = vmatpush1.xpose.msra.mxu0 %v50
    %209 = vmatprep.subr.mxu0 %v53
    %210 = vmatpush1.xpose.msra.mxu0 %v52
    %211 = vmatprep.subr.mxu0 %v55
    %212 = vmatpush1.xpose.msra.mxu0 %v54
    %213 = vmatprep.subr.mxu0 0.0
    %214 = vmatpush1.xpose.msra.mxu0 0.0
    %215 = vmatprep.subr.mxu0 0.0
    %216 = vmatpush1.xpose.msra.mxu0 0.0
    %217 = vmatprep.subr.mxu0 0.0
    %218 = vmatpush1.xpose.msra.mxu0 0.0
    %219 = vmatprep.subr.mxu0 0.0
    %220 = vmatpush1.xpose.msra.mxu0 0.0
    %221 = vmatprep.subr.mxu0 0.0
    %222 = vmatpush1.xpose.msra.mxu0 0.0
    %223 = vmatprep.subr.mxu0 0.0
    %224 = vmatpush1.xpose.msra.mxu0 0.0
    %225 = vmatprep.subr.mxu0 0.0
    %226 = vmatpush1.xpose.msra.mxu0 0.0
    %227 = vmatprep.subr.mxu0 0.0
    %228 = vmatpush1.xpose.msra.mxu0 0.0
    %229 = vmatprep.subr.mxu0 0.0
    %230 = vmatpush1.xpose.msra.mxu0 0.0
    %231 = vmatprep.subr.mxu0 0.0
    %232 = vmatpush1.xpose.msra.mxu0 0.0
    %233 = vmatprep.subr.mxu0 0.0
    %234 = vmatpush1.xpose.msra.mxu0 0.0
    %235 = vmatprep.subr.mxu0 0.0
    %236 = vmatpush1.xpose.msra.mxu0 0.0
    %237 = vmatprep.subr.mxu0 0.0
    %238 = vmatpush1.xpose.msra.mxu0 0.0
    %239 = vmatprep.subr.mxu0 0.0
    %240 = vmatpush1.xpose.msra.mxu0 0.0
    %241 = vmatprep.subr.mxu0 0.0
    %242 = vmatpush1.xpose.msra.mxu0 0.0
    %243 = vmatprep.subr.mxu0 0.0
    %244 = vmatpush1.xpose.msra.mxu0 0.0
    %245 = vmatprep.subr.mxu0 0.0
    %246 = vmatpush1.xpose.msra.mxu0 0.0
    %247 = vmatprep.subr.mxu0 0.0
    %248 = vmatpush1.xpose.msra.mxu0 0.0
    %249 = vmatprep.subr.mxu0 0.0
    %250 = vmatpush1.xpose.msra.mxu0 0.0
    %251 = vmatprep.subr.mxu0 0.0
    %252 = vmatpush1.xpose.msra.mxu0 0.0
    %253 = vmatprep.subr.mxu0 0.0
    %254 = vmatpush1.xpose.msra.mxu0 0.0
    %255 = vmatprep.subr.mxu0 0.0
    %256 = vmatpush1.xpose.msra.mxu0 0.0
    %257 = vmatprep.subr.mxu0 0.0
    %258 = vmatpush1.xpose.msra.mxu0 0.0
    %259 = vmatprep.subr.mxu0 0.0
    %260 = vmatpush1.xpose.msra.mxu0 0.0
    %261 = vmatprep.subr.mxu0 0.0
    %262 = vmatpush1.xpose.msra.mxu0 0.0
    %263 = vmatprep.subr.mxu0 0.0
    %264 = vmatpush1.xpose.msra.mxu0 0.0
    %265 = vmatprep.subr.mxu0 0.0
    %266 = vmatpush1.xpose.msra.mxu0 0.0
    %267 = vmatprep.subr.mxu0 0.0
    %268 = vmatpush1.xpose.msra.mxu0 0.0
    %269 = vmatprep.mubr.f32.mxu0 %v204
    %270 = vmatmul.mubr.f32.gmra.mrb[0].mxu0 %v203
    %v271 = vpop.f32.mrb[0].mxu0
    %v272 = vadd.f32 0.0, %v271
    %v273 = vpop.f32.mrb[0].mxu0
    %274 = vdwg.mxu0
    %v275 = vld [vmem:[#allocation2] sm:$0xff]
    %v276 = vadd.f32 %v275, %v272
    %277 = vst.msk [vmem:[#allocation2] sm:$0xff] %vm94, %v276
    %v278 = vld [vmem:[#allocation3] sm:$0xff]
    %v279 = vadd.f32 %v203, %v204
    %280 = vadd.xlane.f32.xlu0 %v279
    %v281 = vpop.xlane.xlu0 %280
    %v282 = vadd.f32 %v278, %v281
    %vm283 = vcmask 7168
    %284 = vst.msk [vmem:[#allocation3] sm:$0xff] %vm283, %v282
    %s285 = scalar_lea.vmem [#allocation4], 64
    %v286 = vld [vmem:[%s285] sm:$0xff]
    %v287 = vld [vmem:[%s285 + $0x8] sm:$0xff]
    %v288 = vld [vmem:[%s285 + $0x10] sm:$0xff]
    %v289 = vld [vmem:[%s285 + $0x18] sm:$0xff]
    %v290 = vld [vmem:[%s285 + $0x20] sm:$0xff]
    %v291 = vld [vmem:[%s285 + $0x28] sm:$0xff]
    %v292 = vld [vmem:[%s285 + $0x30] sm:$0xff]
    %v293 = vld [vmem:[%s285 + $0x38] sm:$0xff]
    %v294 = vmul.f32 %v286, %v286
    %v295 = vmul.f32 %v287, %v287
    %v296 = vmul.f32 %v288, %v288
    %v297 = vmul.f32 %v289, %v289
    %v298 = vmul.f32 %v290, %v290
    %v299 = vmul.f32 %v291, %v291
    %v300 = vmul.f32 %v292, %v292
    %v301 = vmul.f32 %v293, %v293
    %v302 = vadd.f32 %v294, %v296
    %v303 = vadd.f32 %v302, %v298
    %v304 = vadd.f32 %v303, %v300
    %v305 = vrot.slane %v304, 4
    %v306 = vadd.f32 %v304, %v305
    %v307 = vrot.slane %v306, 2
    %v308 = vadd.f32 %v306, %v307
    %v309 = vrot.slane %v308, 1
    %v310 = vadd.f32 %v308, %v309
    %v311 = vadd.f32 %v295, %v297
    %v312 = vadd.f32 %v311, %v299
    %v313 = vadd.f32 %v312, %v301
    %v314 = vrot.slane %v313, 4
    %v315 = vadd.f32 %v313, %v314
    %v316 = vrot.slane %v315, 2
    %v317 = vadd.f32 %v315, %v316
    %v318 = vrot.slane %v317, 1
    %v319 = vadd.f32 %v317, %v318
    %v320 = vmul.f32 %v85, %v310
    %v321 = vmul.f32 %v85, %v319
    %322 = vmatprep.subr.mxu0 %v287
    %323 = vmatpush1.msra.mxu0 %v286
    %324 = vmatprep.subr.mxu0 %v289
    %325 = vmatpush1.msra.mxu0 %v288
    %326 = vmatprep.subr.mxu0 %v291
    %327 = vmatpush1.msra.mxu0 %v290
    %328 = vmatprep.subr.mxu0 %v293
    %329 = vmatpush1.msra.mxu0 %v292
    %330 = vmatprep.subr.mxu0 0.0
    %331 = vmatpush1.msra.mxu0 0.0
    %332 = vmatprep.subr.mxu0 0.0
    %333 = vmatpush1.msra.mxu0 0.0
    %334 = vmatprep.subr.mxu0 0.0
    %335 = vmatpush1.msra.mxu0 0.0
    %336 = vmatprep.subr.mxu0 0.0
    %337 = vmatpush1.msra.mxu0 0.0
    %338 = vmatprep.subr.mxu0 0.0
    %339 = vmatpush1.msra.mxu0 0.0
    %340 = vmatprep.subr.mxu0 0.0
    %341 = vmatpush1.msra.mxu0 0.0
    %342 = vmatprep.subr.mxu0 0.0
    %343 = vmatpush1.msra.mxu0 0.0
    %344 = vmatprep.subr.mxu0 0.0
    %345 = vmatpush1.msra.mxu0 0.0
    %346 = vmatprep.subr.mxu0 0.0
    %347 = vmatpush1.msra.mxu0 0.0
    %348 = vmatprep.subr.mxu0 0.0
    %349 = vmatpush1.msra.mxu0 0.0
    %350 = vmatprep.subr.mxu0 0.0
    %351 = vmatpush1.msra.mxu0 0.0
    %352 = vmatprep.subr.mxu0 0.0
    %353 = vmatpush1.msra.mxu0 0.0
    %354 = vmatprep.subr.mxu0 0.0
    %355 = vmatpush1.msra.mxu0 0.0
    %356 = vmatprep.subr.mxu0 0.0
    %357 = vmatpush1.msra.mxu0 0.0
    %358 = vmatprep.subr.mxu0 0.0
    %359 = vmatpush1.msra.mxu0 0.0
    %360 = vmatprep.subr.mxu0 0.0
    %361 = vmatpush1.msra.mxu0 0.0
    %362 = vmatprep.subr.mxu0 0.0
    %363 = vmatpush1.msra.mxu0 0.0
    %364 = vmatprep.subr.mxu0 0.0
    %365 = vmatpush1.msra.mxu0 0.0
    %366 = vmatprep.subr.mxu0 0.0
    %367 = vmatpush1.msra.mxu0 0.0
    %368 = vmatprep.subr.mxu0 0.0
    %369 = vmatpush1.msra.mxu0 0.0
    %370 = vmatprep.subr.mxu0 0.0
    %371 = vmatpush1.msra.mxu0 0.0
    %372 = vmatprep.subr.mxu0 0.0
    %373 = vmatpush1.msra.mxu0 0.0
    %374 = vmatprep.subr.mxu0 0.0
    %375 = vmatpush1.msra.mxu0 0.0
    %376 = vmatprep.subr.mxu0 0.0
    %377 = vmatpush1.msra.mxu0 0.0
    %378 = vmatprep.subr.mxu0 0.0
    %379 = vmatpush1.msra.mxu0 0.0
    %380 = vmatprep.subr.mxu0 0.0
    %381 = vmatpush1.msra.mxu0 0.0
    %382 = vmatprep.subr.mxu0 0.0
    %383 = vmatpush1.msra.mxu0 0.0
    %384 = vmatprep.subr.mxu0 0.0
    %385 = vmatpush1.msra.mxu0 0.0
    %386 = vmatprep.mubr.f32.mxu0 0.0
    %387 = vmatmul.mubr.f32.gmra.mrb[0].mxu0 %v96
    %v388 = vpop.f32.mrb[0].mxu0
    %v389 = vadd.f32 %v92, %v388
    %v390 = vpop.f32.mrb[0].mxu0
    %v391 = vadd.f32 %v92, %v390
    %392 = vdwg.mxu0
    %v393 = vadd.f32 %v320, %v389
    %v394 = vadd.f32 %v321, %v391
    %v395 = vrot.slane %v393, 4
    %v396 = vmax.f32 %v393, %v395
    %v397 = vrot.slane %v396, 2
    %v398 = vmax.f32 %v396, %v397
    %v399 = vrot.slane %v398, 1
    %v400 = vmax.f32 %v398, %v399
    %v401 = vrot.slane %v394, 4
    %v402 = vmax.f32 %v394, %v401
    %v403 = vrot.slane %v402, 2
    %v404 = vmax.f32 %v402, %v403
    %v405 = vrot.slane %v404, 1
    %v406 = vmax.f32 %v404, %v405
    %v407 = vsub.f32 %v393, %v400
    %v408 = vsub.f32 %v394, %v406
    %v409 = vmul.f32 %v407, 1.442695
    %v410 = vpow.pop %v409
    %v411 = vmul.f32 %v408, 1.442695
    %v412 = vpow.pop %v411
    %v413 = vrot.slane %v410, 4
    %v414 = vadd.f32 %v410, %v413
    %v415 = vrot.slane %v414, 2
    %v416 = vadd.f32 %v414, %v415
    %v417 = vrot.slane %v416, 1
    %v418 = vadd.f32 %v416, %v417
    %v419 = vrot.slane %v412, 4
    %v420 = vadd.f32 %v412, %v419
    %v421 = vrot.slane %v420, 2
    %v422 = vadd.f32 %v420, %v421
    %v423 = vrot.slane %v422, 1
    %v424 = vadd.f32 %v422, %v423
    %v425 = vrcp.pop %v418
    %v426 = vrcp.pop %v424
    %v427 = vmul.f32 %v410, %v425
    %v428 = vmul.f32 %v412, %v426
    %429 = vmatprep.subr.mxu0 %v287
    %430 = vmatpush1.xpose.msra.mxu0 %v286
    %431 = vmatprep.subr.mxu0 %v289
    %432 = vmatpush1.xpose.msra.mxu0 %v288
    %433 = vmatprep.subr.mxu0 %v291
    %434 = vmatpush1.xpose.msra.mxu0 %v290
    %435 = vmatprep.subr.mxu0 %v293
    %436 = vmatpush1.xpose.msra.mxu0 %v292
    %437 = vmatprep.subr.mxu0 0.0
    %438 = vmatpush1.xpose.msra.mxu0 0.0
    %439 = vmatprep.subr.mxu0 0.0
    %440 = vmatpush1.xpose.msra.mxu0 0.0
    %441 = vmatprep.subr.mxu0 0.0
    %442 = vmatpush1.xpose.msra.mxu0 0.0
    %443 = vmatprep.subr.mxu0 0.0
    %444 = vmatpush1.xpose.msra.mxu0 0.0
    %445 = vmatprep.subr.mxu0 0.0
    %446 = vmatpush1.xpose.msra.mxu0 0.0
    %447 = vmatprep.subr.mxu0 0.0
    %448 = vmatpush1.xpose.msra.mxu0 0.0
    %449 = vmatprep.subr.mxu0 0.0
    %450 = vmatpush1.xpose.msra.mxu0 0.0
    %451 = vmatprep.subr.mxu0 0.0
    %452 = vmatpush1.xpose.msra.mxu0 0.0
    %453 = vmatprep.subr.mxu0 0.0
    %454 = vmatpush1.xpose.msra.mxu0 0.0
    %455 = vmatprep.subr.mxu0 0.0
    %456 = vmatpush1.xpose.msra.mxu0 0.0
    %457 = vmatprep.subr.mxu0 0.0
    %458 = vmatpush1.xpose.msra.mxu0 0.0
    %459 = vmatprep.subr.mxu0 0.0
    %460 = vmatpush1.xpose.msra.mxu0 0.0
    %461 = vmatprep.subr.mxu0 0.0
    %462 = vmatpush1.xpose.msra.mxu0 0.0
    %463 = vmatprep.subr.mxu0 0.0
    %464 = vmatpush1.xpose.msra.mxu0 0.0
    %465 = vmatprep.subr.mxu0 0.0
    %466 = vmatpush1.xpose.msra.mxu0 0.0
    %467 = vmatprep.subr.mxu0 0.0
    %468 = vmatpush1.xpose.msra.mxu0 0.0
    %469 = vmatprep.subr.mxu0 0.0
    %470 = vmatpush1.xpose.msra.mxu0 0.0
    %471 = vmatprep.subr.mxu0 0.0
    %472 = vmatpush1.xpose.msra.mxu0 0.0
    %473 = vmatprep.subr.mxu0 0.0
    %474 = vmatpush1.xpose.msra.mxu0 0.0
    %475 = vmatprep.subr.mxu0 0.0
    %476 = vmatpush1.xpose.msra.mxu0 0.0
    %477 = vmatprep.subr.mxu0 0.0
    %478 = vmatpush1.xpose.msra.mxu0 0.0
    %479 = vmatprep.subr.mxu0 0.0
    %480 = vmatpush1.xpose.msra.mxu0 0.0
    %481 = vmatprep.subr.mxu0 0.0
    %482 = vmatpush1.xpose.msra.mxu0 0.0
    %483 = vmatprep.subr.mxu0 0.0
    %484 = vmatpush1.xpose.msra.mxu0 0.0
    %485 = vmatprep.subr.mxu0 0.0
    %486 = vmatpush1.xpose.msra.mxu0 0.0
    %487 = vmatprep.subr.mxu0 0.0
    %488 = vmatpush1.xpose.msra.mxu0 0.0
    %489 = vmatprep.subr.mxu0 0.0
    %490 = vmatpush1.xpose.msra.mxu0 0.0
    %491 = vmatprep.subr.mxu0 0.0
    %492 = vmatpush1.xpose.msra.mxu0 0.0
    %493 = vmatprep.mubr.f32.mxu0 %v428
    %494 = vmatmul.mubr.f32.gmra.mrb[0].mxu0 %v427
    %v495 = vpop.f32.mrb[0].mxu0
    %v496 = vadd.f32 0.0, %v495
    %v497 = vpop.f32.mrb[0].mxu0
    %498 = vdwg.mxu0
    %s499 = scalar_lea.vmem [#allocation2], 8
    %v500 = vld [vmem:[%s499] sm:$0xff]
    %v501 = vadd.f32 %v500, %v496
    %502 = vst.msk [vmem:[%s499] sm:$0xff] %vm94, %v501
    %s503 = scalar_lea.vmem [#allocation3], 8
    %v504 = vld [vmem:[%s503] sm:$0xff]
    %v505 = vadd.f32 %v427, %v428
    %506 = vadd.xlane.f32.xlu0 %v505
    %v507 = vpop.xlane.xlu0 %506
    %v508 = vadd.f32 %v504, %v507
    %509 = vst.msk [vmem:[%s503] sm:$0xff] %vm283, %v508
    // Predicated region
    $region30: #{tpu_custom_call.1} parent=1 // pred_check
      %p510 = pneg %p35
    $region31: #{tpu_custom_call.1} parent=1 // pred_check_branch
      %512 = sbr.rel (%p510) target = $region33
    $region32: #{tpu_custom_call.1} parent=1 // pred_region
      %v513 = vld [vmem:[%s1] sm:$0xff]
      %v514 = vld [vmem:[#allocation2] sm:$0xff]
      %v515 = vld [vmem:[#allocation2 + $0x8] sm:$0xff]
      %v516 = vld [vmem:[#allocation3] sm:$0xff]
      %v517 = vld [vmem:[#allocation3 + $0x8] sm:$0xff]
      %519 = vset.pattern.permute.xlu0 0
      %520 = vperm.xlu0 %519, %v516
      %v521 = vpop.permute.xlu0 %520
      %524 = vset.pattern.permute.xlu0 0
      %525 = vperm.xlu0 %524, %v517
      %v526 = vpop.permute.xlu0 %525
      %v528 = vmul.f32 %v521, %v513
      %v529 = vmul.f32 %v526, %v513
      %v530 = vsub.f32 %v514, %v528
      %v531 = vsub.f32 %v515, %v529
      %532 = vst.msk [vmem:[#allocation7] sm:$0xff] %vm94, %v530
      %533 = vst.msk [vmem:[#allocation7 + $0x8] sm:$0xff] %vm94, %v531
    $region33: #{tpu_custom_call.1} parent=1 // pred_fallthru
      _
    // Predicated region
    $region34: #{tpu_custom_call.1} parent=1 // pred_check
      _
    $region35: #{tpu_custom_call.1} parent=1 // pred_check_branch
      %535 = sbr.rel (0) target = $region37
    $region36: #{tpu_custom_call.1} parent=1 // pred_region
      %s537 = ssub.s32 256, 256
      %538 = vsyncadd [#allocation6], %s537
      %s539 = sshll.u32 [#allocation7], 4
      %s540 = int_to_ptr.vmem [resolvable:$true] %s539
      %545 = dma.vmem_to_hbm [thread:$0]  %s540, 256, %s5, [#allocation6], 128, 128, 8
    $region37: #{tpu_custom_call.1} parent=1 // pred_fallthru
      _
    // Predicated region
    $region38: #{tpu_custom_call.1} parent=1 // pred_check
      _
    $region39: #{tpu_custom_call.1} parent=1 // pred_check_branch
      %547 = sbr.rel (0) target = $region41
    $region40: #{tpu_custom_call.1} parent=1 // pred_region
      %548 = dma.done [#allocation6], 256
    $region41: #{tpu_custom_call.1} parent=1 // pred_fallthru
      _
    %549 = vsyncpa [#allocation5], 1
    %550 = vsyncpa [#allocation6], 1

</llo_original>
